<compile_context>
chip_gen: v6e
topology: v6e:2x2x1
jax: 0.10.0
libtpu: 0.0.40
codegen_flags: <defaults>
</compile_context>

<pallas_src>
import functools
import numpy as np
import jax
import jax.numpy as jnp
from jax import lax
from jax.experimental import pallas as pl
from jax.experimental.pallas import tpu as pltpu

EPS = 1e-6           # layer_norm_eps
EMB_DIM = 256        # embedding_dim
NUM_ITEMS = 511      # -> vocab V = num_items + 1 = 512
NUM_DEVICES = 8


# --------------------------------------------------------------------------------------------
# Fused kernel: (bf16 features -> f32) LayerNorm + masked mean-pool + extra add + head matmul
# --------------------------------------------------------------------------------------------
def fused_kernel(feat_ref, mask_ref, gamma_ref, beta_ref, extra_ref,
                 headw_ref, headb_ref, out_ref, *, eps, inv_len):
    # feat_ref already holds item + is_present + hour + day + month embeddings + price
    # projection (pre-summed / folded in the glue), stored bf16.  Upcast before LN math.
    e = feat_ref[...].astype(jnp.float32)                              # [tb, L, D]

    # Single-pass LayerNorm statistics over the embedding dim (biased variance, like torch).
    mu = jnp.mean(e, axis=-1, keepdims=True)
    var = jnp.mean(e * e, axis=-1, keepdims=True) - mu * mu
    normed = (e - mu) * lax.rsqrt(var + eps)
    normed = normed * gamma_ref[...][None] + beta_ref[...][None]

    # embeddings[~mask] = 0, then mean over dim=1 (divides by max_len, like torch.mean),
    # then + (sum_price projection + device embedding) folded into `extra`.
    normed = normed * mask_ref[...][..., None]
    check = jnp.sum(normed, axis=1) * inv_len + extra_ref[...]         # [tb, D] f32

    # Head: [tb, D] @ [D, V] on the MXU (bf16 operands, f32 accumulate) + bias.
    out_ref[...] = (jnp.dot(check.astype(headw_ref.dtype), headw_ref[...],
                            preferred_element_type=jnp.float32)
                    + headb_ref[...])


def _pick_tb(B, L, D, budget_bytes=12 << 20):
    """Largest batch tile (multiple of 8 dividing B, or B itself for tiny B) whose per-step
    working set (double-buffered bf16 input + ~3 f32 temporaries ~ 16 bytes/elem) fits the
    budget.  12 MiB keeps the kernel inside v5e's 16 MiB default scoped VMEM and leaves
    headroom on v6e (32 MiB) / v7x (64 MiB physical)."""
    bytes_per_row = 16 * D * max(L, 1)
    max_rows = max(1, budget_bytes // bytes_per_row)
    if B <= 8 or B % 8 != 0:
        return B
    tb = max(8, min(B, (max_rows // 8) * 8))
    while tb > 8 and B % tb != 0:
        tb -= 8
    return tb if B % tb == 0 else B


def mf_encoder_forward(feat_sum, mask, gamma, beta, extra, head_w, head_b, *, tb=None):
    """feat_sum: [B, L, D] bf16 (pre-summed feature embeddings incl. price projection)
       mask:     [B, L] f32, gamma/beta: [1, D] f32, extra: [B, D] f32
       head_w:   [D, V] bf16 (stored bf16 once, outside this wrapper), head_b: [1, V] f32."""
    B, L, D = feat_sum.shape
    V = head_w.shape[1]
    tb = _pick_tb(B, L, D) if tb is None else tb
    assert B % tb == 0

    out = pl.pallas_call(
        functools.partial(fused_kernel, eps=EPS, inv_len=1.0 / L),
        out_shape=jax.ShapeDtypeStruct((B, V), jnp.float32),
        grid_spec=pltpu.PrefetchScalarGridSpec(
            num_scalar_prefetch=0,
            grid=(B // tb,),
            in_specs=[
                pl.BlockSpec((tb, L, D), lambda i: (i, 0, 0)),  # pre-summed features (bf16)
                pl.BlockSpec((tb, L), lambda i: (i, 0)),        # mask (float)
                pl.BlockSpec((1, D), lambda i: (0, 0)),         # layernorm gamma   [1, D]
                pl.BlockSpec((1, D), lambda i: (0, 0)),         # layernorm beta    [1, D]
                pl.BlockSpec((tb, D), lambda i: (i, 0)),        # extra = dev + sum_price proj
                pl.BlockSpec((D, V), lambda i: (0, 0)),         # head weight, resident (bf16)
                pl.BlockSpec((1, V), lambda i: (0, 0)),         # head bias
            ],
            out_specs=pl.BlockSpec((tb, V), lambda i: (i, 0)),  # logits tile [tb, V]
        ),
        compiler_params=pltpu.CompilerParams(dimension_semantics=("parallel",)),
    )(feat_sum, mask, gamma, beta, extra, head_w, head_b)
    return out


# --------------------------------------------------------------------------------------------
# Helpers / reference
# --------------------------------------------------------------------------------------------
def trunc_normal(key, shape, std=0.02):
    return std * jax.random.truncated_normal(key, -2.0, 2.0, shape, dtype=jnp.float32)


def pad_flat(flat, lengths, L, dtype):
    B = len(lengths)
    out = np.zeros((B, L), dtype=dtype)
    off = 0
    for b, l in enumerate(lengths):
        out[b, :l] = np.asarray(flat)[off:off + l]
        off += l
    return jnp.asarray(out)


def reference(feat_f32, mask, gamma, beta, extra, head_w, head_b):
    L = feat_f32.shape[1]
    mu = feat_f32.mean(-1, keepdims=True)
    var = ((feat_f32 - mu) ** 2).mean(-1, keepdims=True)
    normed = (feat_f32 - mu) / jnp.sqrt(var + EPS) * gamma[None] + beta[None]
    normed = normed * mask[..., None]
    check = normed.sum(1) / L + extra
    return jnp.dot(check, head_w, precision=lax.Precision.HIGHEST) + head_b


if __name__ == "__main__":
    B = 2
    lengths = [5, 8]
    L = max(lengths)
    T = sum(lengths)
    D = EMB_DIM
    V = NUM_ITEMS + 1

    key = jax.random.PRNGKey(0)
    ks = jax.random.split(key, 24)

    # ---- parameters (deterministic init: trunc_normal std=0.02, zero biases, ones for norm) ----
    item_table = trunc_normal(ks[0], (NUM_ITEMS + 1, D))
    device_table = trunc_normal(ks[1], (NUM_DEVICES + 1, D))
    ispres_table = trunc_normal(ks[2], (2, D))
    hour_table = trunc_normal(ks[3], (25, D))
    day_table = trunc_normal(ks[4], (32, D))
    month_table = trunc_normal(ks[5], (13, D))
    w_price = trunc_normal(ks[6], (1, D))       # Linear(1, D).weight reshaped to [1, D]
    b_price = jnp.zeros((1, D), jnp.float32)
    w_sp = trunc_normal(ks[7], (1, D))
    b_sp = jnp.zeros((1, D), jnp.float32)
    gamma = jnp.ones((1, D), jnp.float32)
    beta = jnp.zeros((1, D), jnp.float32)
    head_w = trunc_normal(ks[8], (D, V))        # head Linear(D, V).weight.T
    head_b = jnp.zeros((1, V), jnp.float32)
    # Head weight stored bf16 ONCE (hoisted out of the forward wrapper).
    head_w_bf16 = head_w.astype(jnp.bfloat16)

    # ---- inputs (flat ragged event stream + per-batch features) ----
    item_ids = jax.random.randint(ks[9], (T,), 0, NUM_ITEMS + 1)
    price = jax.random.uniform(ks[10], (T,), jnp.float32)
    is_present = jax.random.randint(ks[11], (T,), 0, 2)
    hour = jax.random.randint(ks[12], (T,), 0, 25)
    day = jax.random.randint(ks[13], (T,), 0, 32)
    month = jax.random.randint(ks[14], (T,), 0, 13)
    sum_price = jax.random.uniform(ks[15], (B, 1), jnp.float32)
    device_id = jax.random.randint(ks[16], (B,), 0, NUM_DEVICES + 1)

    # ---- glue: pad ragged stream to [B, L], gather tables, pre-sum features (+price proj) ----
    item_pad = pad_flat(item_ids, lengths, L, np.int32)
    price_pad = pad_flat(price, lengths, L, np.float32)
    ispres_pad = pad_flat(is_present, lengths, L, np.int32)
    hour_pad = pad_flat(hour, lengths, L, np.int32)
    day_pad = pad_flat(day, lengths, L, np.int32)
    month_pad = pad_flat(month, lengths, L, np.int32)
    mask = (jnp.arange(L)[None, :] < jnp.asarray(lengths)[:, None]).astype(jnp.float32)

    # Pre-sum the five gathered feature embeddings AND fold in the price projection (all of
    # this fuses into one XLA gather+add producer): one [B, L, D] stream, stored bf16.
    feat_f32 = (item_table[item_pad]
                + ispres_table[ispres_pad]
                + hour_table[hour_pad]
                + day_table[day_pad]
                + month_table[month_pad]
                + price_pad[..., None] * w_price[None]
                + b_price[None])
    feat_bf16 = feat_f32.astype(jnp.bfloat16)
    # Fold sum_price projection + device embedding into a single per-batch [B, D] add.
    extra = device_table[device_id] + sum_price * w_sp + b_sp

    logits = mf_encoder_forward(feat_bf16, mask, gamma, beta, extra, head_w_bf16, head_b)
    logits = jax.block_until_ready(logits)

    ref = reference(feat_f32, mask, gamma, beta, extra, head_w, head_b)
    assert logits.shape == (B, V)
    np.testing.assert_allclose(np.asarray(logits), np.asarray(ref), rtol=1e-2, atol=1e-2)

    print("KERNEL_OK")
</pallas_src>

<mosaic_0001>
module attributes {stable_mosaic.version = 11 : i64} {
  func.func @fused_kernel(%arg0: i32, %arg1: memref<2x8x256xbf16, #tpu.memory_space<vmem>>, %arg2: memref<2x8xf32, #tpu.memory_space<vmem>>, %arg3: memref<1x256xf32, #tpu.memory_space<vmem>>, %arg4: memref<1x256xf32, #tpu.memory_space<vmem>>, %arg5: memref<2x256xf32, #tpu.memory_space<vmem>>, %arg6: memref<256x512xbf16, #tpu.memory_space<vmem>>, %arg7: memref<1x512xf32, #tpu.memory_space<vmem>>, %arg8: memref<2x512xf32, #tpu.memory_space<vmem>>) attributes {dimension_semantics = [#tpu.dimension_semantics<parallel>], iteration_bounds = array<i64: 1>, scalar_prefetch = 0 : i64, scratch_operands = 0 : i64, tpu.core_type = #tpu.core_type<tc>, window_params = [{transform_indices = @transform_0, window_bounds = array<i64: 2, 8, 256>}, {transform_indices = @transform_1, window_bounds = array<i64: 2, 8>}, {pipeline_mode = #tpu.pipeline_mode<synchronous>, transform_indices = @transform_2, window_bounds = array<i64: 1, 256>}, {pipeline_mode = #tpu.pipeline_mode<synchronous>, transform_indices = @transform_3, window_bounds = array<i64: 1, 256>}, {transform_indices = @transform_4, window_bounds = array<i64: 2, 256>}, {pipeline_mode = #tpu.pipeline_mode<synchronous>, transform_indices = @transform_5, window_bounds = array<i64: 256, 512>}, {pipeline_mode = #tpu.pipeline_mode<synchronous>, transform_indices = @transform_6, window_bounds = array<i64: 1, 512>}, {transform_indices = @transform_7, window_bounds = array<i64: 2, 512>}]} {
    %c0 = arith.constant 0 : index
    %c0_0 = arith.constant 0 : index
    %c0_1 = arith.constant 0 : index
    %0 = vector.load %arg1[%c0, %c0_0, %c0_1] : memref<2x8x256xbf16, #tpu.memory_space<vmem>>, vector<2x8x256xbf16>
    %1 = arith.extf %0 : vector<2x8x256xbf16> to vector<2x8x256xf32>
    %cst = arith.constant dense<0.000000e+00> : vector<2x8xf32>
    %2 = vector.multi_reduction <add>, %1, %cst [2] : vector<2x8x256xf32> to vector<2x8xf32>
    %3 = vector.shape_cast %2 : vector<2x8xf32> to vector<2x8x1xf32>
    %cst_2 = arith.constant 2.560000e+02 : f32
    %4 = vector.broadcast %cst_2 : f32 to vector<2x8x1xf32>
    %5 = arith.divf %3, %4 : vector<2x8x1xf32>
    %6 = arith.mulf %1, %1 : vector<2x8x256xf32>
    %cst_3 = arith.constant dense<0.000000e+00> : vector<2x8xf32>
    %7 = vector.multi_reduction <add>, %6, %cst_3 [2] : vector<2x8x256xf32> to vector<2x8xf32>
    %8 = vector.shape_cast %7 : vector<2x8xf32> to vector<2x8x1xf32>
    %cst_4 = arith.constant 2.560000e+02 : f32
    %9 = vector.broadcast %cst_4 : f32 to vector<2x8x1xf32>
    %10 = arith.divf %8, %9 : vector<2x8x1xf32>
    %11 = arith.mulf %5, %5 : vector<2x8x1xf32>
    %12 = arith.subf %10, %11 : vector<2x8x1xf32>
    %13 = vector.broadcast %5 : vector<2x8x1xf32> to vector<2x8x256xf32>
    %14 = arith.subf %1, %13 : vector<2x8x256xf32>
    %cst_5 = arith.constant 9.99999997E-7 : f32
    %15 = vector.broadcast %cst_5 : f32 to vector<2x8x1xf32>
    %16 = arith.addf %12, %15 : vector<2x8x1xf32>
    %17 = math.rsqrt %16 : vector<2x8x1xf32>
    %18 = vector.broadcast %17 : vector<2x8x1xf32> to vector<2x8x256xf32>
    %19 = arith.mulf %14, %18 : vector<2x8x256xf32>
    %c0_6 = arith.constant 0 : index
    %c0_7 = arith.constant 0 : index
    %20 = vector.load %arg3[%c0_6, %c0_7] : memref<1x256xf32, #tpu.memory_space<vmem>>, vector<1x256xf32>
    %21 = vector.shape_cast %20 : vector<1x256xf32> to vector<1x1x256xf32>
    %22 = vector.broadcast %21 : vector<1x1x256xf32> to vector<2x8x256xf32>
    %23 = arith.mulf %19, %22 : vector<2x8x256xf32>
    %c0_8 = arith.constant 0 : index
    %c0_9 = arith.constant 0 : index
    %24 = vector.load %arg4[%c0_8, %c0_9] : memref<1x256xf32, #tpu.memory_space<vmem>>, vector<1x256xf32>
    %25 = vector.shape_cast %24 : vector<1x256xf32> to vector<1x1x256xf32>
    %26 = vector.broadcast %25 : vector<1x1x256xf32> to vector<2x8x256xf32>
    %27 = arith.addf %23, %26 : vector<2x8x256xf32>
    %c0_10 = arith.constant 0 : index
    %c0_11 = arith.constant 0 : index
    %28 = vector.load %arg2[%c0_10, %c0_11] : memref<2x8xf32, #tpu.memory_space<vmem>>, vector<2x8xf32>
    %29 = vector.shape_cast %28 : vector<2x8xf32> to vector<2x8x1xf32>
    %30 = vector.broadcast %29 : vector<2x8x1xf32> to vector<2x8x256xf32>
    %31 = arith.mulf %27, %30 : vector<2x8x256xf32>
    %cst_12 = arith.constant dense<0.000000e+00> : vector<2x256xf32>
    %32 = vector.multi_reduction <add>, %31, %cst_12 [1] : vector<2x8x256xf32> to vector<2x256xf32>
    %cst_13 = arith.constant 1.250000e-01 : f32
    %33 = vector.broadcast %cst_13 : f32 to vector<2x256xf32>
    %34 = arith.mulf %32, %33 : vector<2x256xf32>
    %c0_14 = arith.constant 0 : index
    %c0_15 = arith.constant 0 : index
    %35 = vector.load %arg5[%c0_14, %c0_15] : memref<2x256xf32, #tpu.memory_space<vmem>>, vector<2x256xf32>
    %36 = arith.addf %34, %35 : vector<2x256xf32>
    %37 = arith.truncf %36 : vector<2x256xf32> to vector<2x256xbf16>
    %c0_16 = arith.constant 0 : index
    %c0_17 = arith.constant 0 : index
    %38 = vector.load %arg6[%c0_16, %c0_17] : memref<256x512xbf16, #tpu.memory_space<vmem>>, vector<256x512xbf16>
    %cst_18 = arith.constant dense<0.000000e+00> : vector<2x512xf32>
    %39 = tpu.matmul %37, %38, %cst_18 {dimension_numbers = #tpu.dot_dimension_numbers<[1], [0], [0], [1], [0, 0, 1, 1], [], []>} : vector<2x256xbf16>, vector<256x512xbf16>, vector<2x512xf32> -> vector<2x512xf32>
    %c0_19 = arith.constant 0 : index
    %c0_20 = arith.constant 0 : index
    %40 = vector.load %arg7[%c0_19, %c0_20] : memref<1x512xf32, #tpu.memory_space<vmem>>, vector<1x512xf32>
    %41 = vector.broadcast %40 : vector<1x512xf32> to vector<2x512xf32>
    %42 = arith.addf %39, %41 : vector<2x512xf32>
    %c0_21 = arith.constant 0 : index
    %c0_22 = arith.constant 0 : index
    %43 = vector.load %arg8[%c0_21, %c0_22] : memref<2x512xf32, #tpu.memory_space<vmem>>, vector<2x512xf32>
    tpu.vector_store %arg8[%c0_21, %c0_22], %42 {strides = array<i32>} : memref<2x512xf32, #tpu.memory_space<vmem>>, vector<2x512xf32>,
    return
  }
  func.func @transform_0(%arg0: i32) -> (i32, i32, i32) {
    %c0_i32 = arith.constant 0 : i32
    %c0_i32_0 = arith.constant 0 : i32
    %c0_i32_1 = arith.constant 0 : i32
    return %arg0, %c0_i32, %c0_i32_0 : i32, i32, i32
  }
  func.func @transform_1(%arg0: i32) -> (i32, i32) {
    %c0_i32 = arith.constant 0 : i32
    %c0_i32_0 = arith.constant 0 : i32
    return %arg0, %c0_i32 : i32, i32
  }
  func.func @transform_2(%arg0: i32) -> (i32, i32) {
    %c0_i32 = arith.constant 0 : i32
    %c0_i32_0 = arith.constant 0 : i32
    %c0_i32_1 = arith.constant 0 : i32
    return %c0_i32, %c0_i32_0 : i32, i32
  }
  func.func @transform_3(%arg0: i32) -> (i32, i32) {
    %c0_i32 = arith.constant 0 : i32
    %c0_i32_0 = arith.constant 0 : i32
    %c0_i32_1 = arith.constant 0 : i32
    return %c0_i32, %c0_i32_0 : i32, i32
  }
  func.func @transform_4(%arg0: i32) -> (i32, i32) {
    %c0_i32 = arith.constant 0 : i32
    %c0_i32_0 = arith.constant 0 : i32
    return %arg0, %c0_i32 : i32, i32
  }
  func.func @transform_5(%arg0: i32) -> (i32, i32) {
    %c0_i32 = arith.constant 0 : i32
    %c0_i32_0 = arith.constant 0 : i32
    %c0_i32_1 = arith.constant 0 : i32
    return %c0_i32, %c0_i32_0 : i32, i32
  }
  func.func @transform_6(%arg0: i32) -> (i32, i32) {
    %c0_i32 = arith.constant 0 : i32
    %c0_i32_0 = arith.constant 0 : i32
    %c0_i32_1 = arith.constant 0 : i32
    return %c0_i32, %c0_i32_0 : i32, i32
  }
  func.func @transform_7(%arg0: i32) -> (i32, i32) {
    %c0_i32 = arith.constant 0 : i32
    %c0_i32_0 = arith.constant 0 : i32
    return %arg0, %c0_i32 : i32, i32
  }
}

</mosaic_0001>

<llo_original>
// kernel: tpu_custom_call.1
$region0: #{tpu_custom_call.1}
  #allocation0 [shape = 'u32[]', space=smem, size = 0x4, offset = 0x4, fixed_abs, tag = 'smem constant byte address 0x4 - core index']
  #allocation1 [shape = 'u32[144,128]{1,0:T(1,128)}', space=vmem, size = 0x12000, scoped, tag = 'internal scratch']
  %s0 = inlined_call_operand.hbm [shape: bf16[2,8,256], index: 0, kind: input, shape index: {}]
  %s1 = inlined_call_operand.hbm [shape: f32[2,8], index: 1, kind: input, shape index: {}]
  %s2 = inlined_call_operand.hbm [shape: f32[1,256], index: 2, kind: input, shape index: {}]
  %s3 = inlined_call_operand.hbm [shape: f32[1,256], index: 3, kind: input, shape index: {}]
  %s4 = inlined_call_operand.vmem [shape: f32[2,256], index: 4, kind: input, shape index: {}]
  %s5 = inlined_call_operand.hbm [shape: bf16[256,512], index: 5, kind: input, shape index: {}]
  %s6 = inlined_call_operand.vmem [shape: f32[1,512], index: 6, kind: input, shape index: {}]
  %s7 = inlined_call_operand.hbm [shape: f32[2,512], index: 7, kind: output, shape index: {}]
  %s8 = sld [smem:[#allocation0]]
  $region58: #{tpu_custom_call.1} parent=0
    _
  %s10 = ssub.s32 1, %s8
  %s11 = scalar_select 0, %s10, %s8
  $region1: #{tpu_custom_call.1} parent=0
    #allocation2 [shape = 'u8[8192]{0}', space=vmem, size = 0x2000, scoped, tag = 'input window, operand 0, single buffered']
    #allocation3 [shape = 's32[1]{0}', space=sflag, size = 0x4, scoped, tag = 'scoped memory for tpu_custom_call.1']
    #allocation4 [shape = 's32[1]{0}', space=sflag, size = 0x4, scoped, tag = 'scoped memory for tpu_custom_call.1']
    #allocation5 [shape = 'u8[1024]{0}', space=vmem, size = 0x400, scoped, tag = 'input window, operand 1, single buffered']
    #allocation6 [shape = 's32[1]{0}', space=sflag, size = 0x4, scoped, tag = 'scoped memory for tpu_custom_call.1']
    #allocation7 [shape = 'u8[1024]{0}', space=vmem, size = 0x400, scoped, tag = 'input window, operand 2, single buffered']
    #allocation8 [shape = 'u8[1024]{0}', space=vmem, size = 0x400, scoped, tag = 'input window, operand 3, single buffered']
    #allocation9 [shape = 's32[1]{0}', space=sflag, size = 0x4, scoped, tag = 'scoped memory for tpu_custom_call.1']
    #allocation10 [shape = 'u8[262144]{0}', space=vmem, size = 0x40000, scoped, tag = 'input window, operand 5, single buffered']
    #allocation11 [shape = 'u8[4096]{0}', space=vmem, size = 0x1000, scoped, tag = 'output window, operand 0, single buffered']
    %12 = vsyncpa [#allocation3], 0
    %13 = vsyncpa [#allocation6], 0
    %14 = vsyncpa [#allocation9], 0
    %15 = vsyncpa [#allocation4], 0
    // Predicated region
    $region2: #{tpu_custom_call.1} parent=1 // pred_check
      _
    $region3: #{tpu_custom_call.1} parent=1 // pred_check_branch
      %17 = sbr.rel (0) target = $region5
    $region4: #{tpu_custom_call.1} parent=1 // pred_region
      %s19 = ssub.s32 256, 256
      %20 = vsyncadd [#allocation3], %s19
      %s21 = sshll.u32 [#allocation2], 4
      %s22 = int_to_ptr.vmem [resolvable:$true] %s21
      %27 = dma.hbm_to_vmem [thread:$0]  %s0, 256, %s22, [#allocation3], 128, 128, 8
    $region5: #{tpu_custom_call.1} parent=1 // pred_fallthru
      _
    // Predicated region
    $region6: #{tpu_custom_call.1} parent=1 // pred_check
      _
    $region7: #{tpu_custom_call.1} parent=1 // pred_check_branch
      %29 = sbr.rel (0) target = $region9
    $region8: #{tpu_custom_call.1} parent=1 // pred_region
      %s31 = ssub.s32 32, 32
      %32 = vsyncadd [#allocation6], %s31
      %s34 = sshll.u32 [#allocation5], 4
      %s35 = int_to_ptr.vmem [resolvable:$true] %s34
      %37 = dma.hbm_to_vmem [thread:$0]  %s1, 32, %s35, [#allocation6]
    $region9: #{tpu_custom_call.1} parent=1 // pred_fallthru
      _
    // Predicated region
    $region10: #{tpu_custom_call.1} parent=1 // pred_check
      _
    $region11: #{tpu_custom_call.1} parent=1 // pred_check_branch
      %39 = sbr.rel (0) target = $region13
    $region12: #{tpu_custom_call.1} parent=1 // pred_region
      %s41 = ssub.s32 32, 32
      %42 = vsyncadd [#allocation6], %s41
      %s44 = sshll.u32 [#allocation7], 4
      %s45 = int_to_ptr.vmem [resolvable:$true] %s44
      %47 = dma.hbm_to_vmem [thread:$0]  %s2, 32, %s45, [#allocation6]
    $region13: #{tpu_custom_call.1} parent=1 // pred_fallthru
      _
    // Predicated region
    $region14: #{tpu_custom_call.1} parent=1 // pred_check
      _
    $region15: #{tpu_custom_call.1} parent=1 // pred_check_branch
      %49 = sbr.rel (0) target = $region17
    $region16: #{tpu_custom_call.1} parent=1 // pred_region
      %s51 = ssub.s32 32, 32
      %52 = vsyncadd [#allocation9], %s51
      %s54 = sshll.u32 [#allocation8], 4
      %s55 = int_to_ptr.vmem [resolvable:$true] %s54
      %57 = dma.hbm_to_vmem [thread:$0]  %s3, 32, %s55, [#allocation9]
    $region17: #{tpu_custom_call.1} parent=1 // pred_fallthru
      _
    // Predicated region
    $region18: #{tpu_custom_call.1} parent=1 // pred_check
      _
    $region19: #{tpu_custom_call.1} parent=1 // pred_check_branch
      %59 = sbr.rel (0) target = $region21
    $region20: #{tpu_custom_call.1} parent=1 // pred_region
      _
    $region21: #{tpu_custom_call.1} parent=1 // pred_fallthru
      _
    // Predicated region
    $region22: #{tpu_custom_call.1} parent=1 // pred_check
      _
    $region23: #{tpu_custom_call.1} parent=1 // pred_check_branch
      %61 = sbr.rel (0) target = $region25
    $region24: #{tpu_custom_call.1} parent=1 // pred_region
      %s63 = ssub.s32 8192, 8192
      %64 = vsyncadd [#allocation9], %s63
      %s65 = sshll.u32 [#allocation10], 4
      %s66 = int_to_ptr.vmem [resolvable:$true] %s65
      %71 = dma.hbm_to_vmem [thread:$0]  %s5, 8192, %s66, [#allocation9], 256, 256, 16
    $region25: #{tpu_custom_call.1} parent=1 // pred_fallthru
      _
    // Predicated region
    $region26: #{tpu_custom_call.1} parent=1 // pred_check
      _
    $region27: #{tpu_custom_call.1} parent=1 // pred_check_branch
      %73 = sbr.rel (0) target = $region29
    $region28: #{tpu_custom_call.1} parent=1 // pred_region
      _
    $region29: #{tpu_custom_call.1} parent=1 // pred_fallthru
      _
    // Predicated region
    $region30: #{tpu_custom_call.1} parent=1 // pred_check
      _
    $region31: #{tpu_custom_call.1} parent=1 // pred_check_branch
      %75 = sbr.rel (0) target = $region33
    $region32: #{tpu_custom_call.1} parent=1 // pred_region
      %76 = dma.done [#allocation3], 256
    $region33: #{tpu_custom_call.1} parent=1 // pred_fallthru
      _
    // Predicated region
    $region34: #{tpu_custom_call.1} parent=1 // pred_check
      _
    $region35: #{tpu_custom_call.1} parent=1 // pred_check_branch
      %78 = sbr.rel (0) target = $region37
    $region36: #{tpu_custom_call.1} parent=1 // pred_region
      %79 = dma.done [#allocation6], 32
    $region37: #{tpu_custom_call.1} parent=1 // pred_fallthru
      _
    // Predicated region
    $region38: #{tpu_custom_call.1} parent=1 // pred_check
      _
    $region39: #{tpu_custom_call.1} parent=1 // pred_check_branch
      %81 = sbr.rel (0) target = $region41
    $region40: #{tpu_custom_call.1} parent=1 // pred_region
      %82 = dma.done [#allocation6], 32
    $region41: #{tpu_custom_call.1} parent=1 // pred_fallthru
      _
    // Predicated region
    $region42: #{tpu_custom_call.1} parent=1 // pred_check
      _
    $region43: #{tpu_custom_call.1} parent=1 // pred_check_branch
      %84 = sbr.rel (0) target = $region45
    $region44: #{tpu_custom_call.1} parent=1 // pred_region
      %85 = dma.done [#allocation9], 32
    $region45: #{tpu_custom_call.1} parent=1 // pred_fallthru
      _
    // Predicated region
    $region46: #{tpu_custom_call.1} parent=1 // pred_check
      _
    $region47: #{tpu_custom_call.1} parent=1 // pred_check_branch
      %87 = sbr.rel (0) target = $region49
    $region48: #{tpu_custom_call.1} parent=1 // pred_region
      %88 = dma.done [#allocation9], 8192
    $region49: #{tpu_custom_call.1} parent=1 // pred_fallthru
      _
    %v89 = vld [vmem:[#allocation2] sm:$0xff]
    %v90 = vld [vmem:[#allocation2 + $0x8] sm:$0xff]
    %v91 = vunpack.c.l.bf16 %v89
    %v92 = vunpack.c.h.bf16 %v89
    %v93 = vunpack.c.l.bf16 %v90
    %v94 = vunpack.c.h.bf16 %v90
    %v95 = vadd.f32 %v91, %v92
    %96 = vadd.xlane.f32.xlu0 %v95
    %v97 = vpop.xlane.xlu0 %96
    %v98 = vadd.f32 %v93, %v94
    %99 = vadd.xlane.f32.xlu0 %v98
    %v100 = vpop.xlane.xlu0 %99
    %v101 = vrcp.pop 256.0
    %v102 = vmul.f32 %v97, %v101
    %v103 = vmul.f32 %v100, %v101
    %v104 = vmul.f32 %v91, %v91
    %v105 = vmul.f32 %v92, %v92
    %v106 = vmul.f32 %v93, %v93
    %v107 = vmul.f32 %v94, %v94
    %v108 = vadd.f32 %v104, %v105
    %109 = vadd.xlane.f32.xlu0 %v108
    %v110 = vpop.xlane.xlu0 %109
    %v111 = vadd.f32 %v106, %v107
    %112 = vadd.xlane.f32.xlu0 %v111
    %v113 = vpop.xlane.xlu0 %112
    %v114 = vmul.f32 %v110, %v101
    %v115 = vmul.f32 %v113, %v101
    %v116 = vmul.f32 %v102, %v102
    %v117 = vmul.f32 %v103, %v103
    %v118 = vsub.f32 %v114, %v116
    %v119 = vsub.f32 %v115, %v117
    %v120 = vsub.f32 %v91, %v102
    %v121 = vsub.f32 %v92, %v102
    %v122 = vsub.f32 %v93, %v103
    %v123 = vsub.f32 %v94, %v103
    %v124 = vadd.f32 %v118, 1e-06
    %v125 = vadd.f32 %v119, 1e-06
    %v126 = vrsqrt.pop %v124
    %v127 = vrsqrt.pop %v125
    %v128 = vmul.f32 %v120, %v126
    %v129 = vmul.f32 %v121, %v126
    %v130 = vmul.f32 %v122, %v127
    %v131 = vmul.f32 %v123, %v127
    %v132 = vld [vmem:[#allocation7] sm:$0x3]
    %v134 = vlaneseq
    %v135 = vshrl.u32 %v134, 7
    %v136 = vsub.s32 0, %v135
    %v137 = vrot.slane %v132, %v136
    %v138 = vlaneseq
    %v139 = vshrl.u32 %v138, 7
    %v140 = vsub.s32 1, %v139
    %v141 = vrot.slane %v132, %v140
    %v144 = vmul.f32 %v128, %v137
    %v145 = vmul.f32 %v129, %v141
    %v146 = vmul.f32 %v130, %v137
    %v147 = vmul.f32 %v131, %v141
    %v148 = vld [vmem:[#allocation8] sm:$0x3]
    %v150 = vlaneseq
    %v151 = vshrl.u32 %v150, 7
    %v152 = vsub.s32 0, %v151
    %v153 = vrot.slane %v148, %v152
    %v154 = vlaneseq
    %v155 = vshrl.u32 %v154, 7
    %v156 = vsub.s32 1, %v155
    %v157 = vrot.slane %v148, %v156
    %v160 = vadd.f32 %v144, %v153
    %v161 = vadd.f32 %v145, %v157
    %v162 = vadd.f32 %v146, %v153
    %v163 = vadd.f32 %v147, %v157
    %v164 = vld [vmem:[#allocation5] sm:$0x3]
    %v165 = vlaneseq
    %v166 = vshrl.u32 %v165, 7
    %v167 = vsub.s32 0, %v166
    %v168 = vrot.slane %v164, %v167
    %170 = vbcast.lane.b32.xlu0 %v168, 256
    %v171 = vpop.permute.xlu0 %170
    %v172 = vlaneseq
    %v173 = vshrl.u32 %v172, 7
    %v174 = vsub.s32 1, %v173
    %v175 = vrot.slane %v164, %v174
    %177 = vbcast.lane.b32.xlu0 %v175, 256
    %v178 = vpop.permute.xlu0 %177
    %v179 = vmul.f32 %v160, %v171
    %v180 = vmul.f32 %v161, %v171
    %v181 = vmul.f32 %v162, %v178
    %v182 = vmul.f32 %v163, %v178
    %v183 = vrot.slane %v179, 4
    %v184 = vadd.f32 %v179, %v183
    %v185 = vrot.slane %v184, 2
    %v186 = vadd.f32 %v184, %v185
    %v187 = vrot.slane %v186, 1
    %v188 = vadd.f32 %v186, %v187
    %v189 = vrot.slane %v180, 4
    %v190 = vadd.f32 %v180, %v189
    %v191 = vrot.slane %v190, 2
    %v192 = vadd.f32 %v190, %v191
    %v193 = vrot.slane %v192, 1
    %v194 = vadd.f32 %v192, %v193
    %v195 = vrot.slane %v181, 4
    %v196 = vadd.f32 %v181, %v195
    %v197 = vrot.slane %v196, 2
    %v198 = vadd.f32 %v196, %v197
    %v199 = vrot.slane %v198, 1
    %v200 = vadd.f32 %v198, %v199
    %v201 = vrot.slane %v182, 4
    %v202 = vadd.f32 %v182, %v201
    %v203 = vrot.slane %v202, 2
    %v204 = vadd.f32 %v202, %v203
    %v205 = vrot.slane %v204, 1
    %v206 = vadd.f32 %v204, %v205
    %v207 = vmul.f32 %v188, 0.125
    %v208 = vmul.f32 %v194, 0.125
    %v209 = vmul.f32 %v200, 0.125
    %v210 = vmul.f32 %v206, 0.125
    %v211 = vld [vmem:[%s4] sm:$0xf]
    %v214 = vunpack.c.l.s4 1983009808
    %v215 = vunpack.c.0.s8 %v214
    %v216 = vlaneseq
    %v217 = vshrl.u32 %v216, 7
    %v218 = vsub.s32 %v215, %v217
    %v219 = vrot.slane %v211, %v218
    %v220 = vcombine.high %v219, %v219
    %v221 = vrot.slane %v219, 1
    %v222 = vrot.slane %v220, 1
    %v227 = vadd.f32 %v207, %v219
    %v228 = vadd.f32 %v208, %v220
    %v229 = vadd.f32 %v209, %v221
    %v230 = vadd.f32 %v210, %v222
    %v231 = vpack.c.bf16 %v227, %v227
    %v232 = vpack.c.bf16 %v228, %v228
    %v233 = vpack.c.bf16 %v229, %v229
    %v234 = vpack.c.bf16 %v230, %v230
    %v235 = vld [vmem:[#allocation10] sm:$0xff]
    %v236 = vld [vmem:[#allocation10 + $0x8] sm:$0xff]
    %v237 = vld [vmem:[#allocation10 + $0x10] sm:$0xff]
    %v238 = vld [vmem:[#allocation10 + $0x18] sm:$0xff]
    %v239 = vld [vmem:[#allocation10 + $0x20] sm:$0xff]
    %v240 = vld [vmem:[#allocation10 + $0x28] sm:$0xff]
    %v241 = vld [vmem:[#allocation10 + $0x30] sm:$0xff]
    %v242 = vld [vmem:[#allocation10 + $0x38] sm:$0xff]
    %v243 = vld [vmem:[#allocation10 + $0x40] sm:$0xff]
    %v244 = vld [vmem:[#allocation10 + $0x48] sm:$0xff]
    %v245 = vld [vmem:[#allocation10 + $0x50] sm:$0xff]
    %v246 = vld [vmem:[#allocation10 + $0x58] sm:$0xff]
    %v247 = vld [vmem:[#allocation10 + $0x60] sm:$0xff]
    %v248 = vld [vmem:[#allocation10 + $0x68] sm:$0xff]
    %v249 = vld [vmem:[#allocation10 + $0x70] sm:$0xff]
    %v250 = vld [vmem:[#allocation10 + $0x78] sm:$0xff]
    %v251 = vld [vmem:[#allocation10 + $0x80] sm:$0xff]
    %v252 = vld [vmem:[#allocation10 + $0x88] sm:$0xff]
    %v253 = vld [vmem:[#allocation10 + $0x90] sm:$0xff]
    %v254 = vld [vmem:[#allocation10 + $0x98] sm:$0xff]
    %v255 = vld [vmem:[#allocation10 + $0xa0] sm:$0xff]
    %v256 = vld [vmem:[#allocation10 + $0xa8] sm:$0xff]
    %v257 = vld [vmem:[#allocation10 + $0xb0] sm:$0xff]
    %v258 = vld [vmem:[#allocation10 + $0xb8] sm:$0xff]
    %v259 = vld [vmem:[#allocation10 + $0xc0] sm:$0xff]
    %v260 = vld [vmem:[#allocation10 + $0xc8] sm:$0xff]
    %v261 = vld [vmem:[#allocation10 + $0xd0] sm:$0xff]
    %v262 = vld [vmem:[#allocation10 + $0xd8] sm:$0xff]
    %v263 = vld [vmem:[#allocation10 + $0xe0] sm:$0xff]
    %v264 = vld [vmem:[#allocation10 + $0xe8] sm:$0xff]
    %v265 = vld [vmem:[#allocation10 + $0xf0] sm:$0xff]
    %v266 = vld [vmem:[#allocation10 + $0xf8] sm:$0xff]
    %v267 = vld [vmem:[#allocation10 + $0x100] sm:$0xff]
    %v268 = vld [vmem:[#allocation10 + $0x108] sm:$0xff]
    %v269 = vld [vmem:[#allocation10 + $0x110] sm:$0xff]
    %v270 = vld [vmem:[#allocation10 + $0x118] sm:$0xff]
    %v271 = vld [vmem:[#allocation10 + $0x120] sm:$0xff]
    %v272 = vld [vmem:[#allocation10 + $0x128] sm:$0xff]
    %v273 = vld [vmem:[#allocation10 + $0x130] sm:$0xff]
    %v274 = vld [vmem:[#allocation10 + $0x138] sm:$0xff]
    %v275 = vld [vmem:[#allocation10 + $0x140] sm:$0xff]
    %v276 = vld [vmem:[#allocation10 + $0x148] sm:$0xff]
    %v277 = vld [vmem:[#allocation10 + $0x150] sm:$0xff]
    %v278 = vld [vmem:[#allocation10 + $0x158] sm:$0xff]
    %v279 = vld [vmem:[#allocation10 + $0x160] sm:$0xff]
    %v280 = vld [vmem:[#allocation10 + $0x168] sm:$0xff]
    %v281 = vld [vmem:[#allocation10 + $0x170] sm:$0xff]
    %v282 = vld [vmem:[#allocation10 + $0x178] sm:$0xff]
    %v283 = vld [vmem:[#allocation10 + $0x180] sm:$0xff]
    %v284 = vld [vmem:[#allocation10 + $0x188] sm:$0xff]
    %v285 = vld [vmem:[#allocation10 + $0x190] sm:$0xff]
    %v286 = vld [vmem:[#allocation10 + $0x198] sm:$0xff]
    %v287 = vld [vmem:[#allocation10 + $0x1a0] sm:$0xff]
    %v288 = vld [vmem:[#allocation10 + $0x1a8] sm:$0xff]
    %v289 = vld [vmem:[#allocation10 + $0x1b0] sm:$0xff]
    %v290 = vld [vmem:[#allocation10 + $0x1b8] sm:$0xff]
    %v291 = vld [vmem:[#allocation10 + $0x1c0] sm:$0xff]
    %v292 = vld [vmem:[#allocation10 + $0x1c8] sm:$0xff]
    %v293 = vld [vmem:[#allocation10 + $0x1d0] sm:$0xff]
    %v294 = vld [vmem:[#allocation10 + $0x1d8] sm:$0xff]
    %v295 = vld [vmem:[#allocation10 + $0x1e0] sm:$0xff]
    %v296 = vld [vmem:[#allocation10 + $0x1e8] sm:$0xff]
    %v297 = vld [vmem:[#allocation10 + $0x1f0] sm:$0xff]
    %v298 = vld [vmem:[#allocation10 + $0x1f8] sm:$0xff]
    %v299 = vld [vmem:[%s6] sm:$0xf]
    %v301 = vlaneseq
    %v302 = vshrl.u32 %v301, 7
    %v303 = vsub.s32 0, %v302
    %v304 = vrot.slane %v299, %v303
    %v305 = vlaneseq
    %v306 = vshrl.u32 %v305, 7
    %v307 = vsub.s32 1, %v306
    %v308 = vrot.slane %v299, %v307
    %v309 = vlaneseq
    %v310 = vshrl.u32 %v309, 7
    %v311 = vsub.s32 2, %v310
    %v312 = vrot.slane %v299, %v311
    %v313 = vlaneseq
    %v314 = vshrl.u32 %v313, 7
    %v315 = vsub.s32 3, %v314
    %v316 = vrot.slane %v299, %v315
    %v325 = vunpack.c.l.b16 %v231
    %v326 = vunpack.c.l.b16 %v232
    %v327 = vunpack.c.l.b16 %v233
    %v328 = vunpack.c.l.b16 %v234
    %v329 = vrot.slane %v327, 7
    %vm330 = vcmask 1041409
    %v331 = vsel %vm330, %v329, %v325
    %v332 = vrot.slane %v328, 7
    %v333 = vsel %vm330, %v332, %v326
    %v334 = vpack.c.b16 %v331, %v331
    %v335 = vpack.c.b16 %v333, %v333
    %v402 = vunpack.c.l.b16 %v235
    %v403 = vunpack.c.h.b16 %v235
    %v404 = vunpack.c.l.b16 %v236
    %v405 = vunpack.c.h.b16 %v236
    %v406 = vunpack.c.l.b16 %v237
    %v407 = vunpack.c.h.b16 %v237
    %v408 = vunpack.c.l.b16 %v238
    %v409 = vunpack.c.h.b16 %v238
    %v410 = vunpack.c.l.b16 %v239
    %v411 = vunpack.c.h.b16 %v239
    %v412 = vunpack.c.l.b16 %v240
    %v413 = vunpack.c.h.b16 %v240
    %v414 = vunpack.c.l.b16 %v241
    %v415 = vunpack.c.h.b16 %v241
    %v416 = vunpack.c.l.b16 %v242
    %v417 = vunpack.c.h.b16 %v242
    %v418 = vunpack.c.l.b16 %v243
    %v419 = vunpack.c.h.b16 %v243
    %v420 = vunpack.c.l.b16 %v244
    %v421 = vunpack.c.h.b16 %v244
    %v422 = vunpack.c.l.b16 %v245
    %v423 = vunpack.c.h.b16 %v245
    %v424 = vunpack.c.l.b16 %v246
    %v425 = vunpack.c.h.b16 %v246
    %v426 = vunpack.c.l.b16 %v247
    %v427 = vunpack.c.h.b16 %v247
    %v428 = vunpack.c.l.b16 %v248
    %v429 = vunpack.c.h.b16 %v248
    %v430 = vunpack.c.l.b16 %v249
    %v431 = vunpack.c.h.b16 %v249
    %v432 = vunpack.c.l.b16 %v250
    %v433 = vunpack.c.h.b16 %v250
    %v434 = vunpack.c.l.b16 %v251
    %v435 = vunpack.c.h.b16 %v251
    %v436 = vunpack.c.l.b16 %v252
    %v437 = vunpack.c.h.b16 %v252
    %v438 = vunpack.c.l.b16 %v253
    %v439 = vunpack.c.h.b16 %v253
    %v440 = vunpack.c.l.b16 %v254
    %v441 = vunpack.c.h.b16 %v254
    %v442 = vunpack.c.l.b16 %v255
    %v443 = vunpack.c.h.b16 %v255
    %v444 = vunpack.c.l.b16 %v256
    %v445 = vunpack.c.h.b16 %v256
    %v446 = vunpack.c.l.b16 %v257
    %v447 = vunpack.c.h.b16 %v257
    %v448 = vunpack.c.l.b16 %v258
    %v449 = vunpack.c.h.b16 %v258
    %v450 = vunpack.c.l.b16 %v259
    %v451 = vunpack.c.h.b16 %v259
    %v452 = vunpack.c.l.b16 %v260
    %v453 = vunpack.c.h.b16 %v260
    %v454 = vunpack.c.l.b16 %v261
    %v455 = vunpack.c.h.b16 %v261
    %v456 = vunpack.c.l.b16 %v262
    %v457 = vunpack.c.h.b16 %v262
    %v458 = vunpack.c.l.b16 %v263
    %v459 = vunpack.c.h.b16 %v263
    %v460 = vunpack.c.l.b16 %v264
    %v461 = vunpack.c.h.b16 %v264
    %v462 = vunpack.c.l.b16 %v265
    %v463 = vunpack.c.h.b16 %v265
    %v464 = vunpack.c.l.b16 %v266
    %v465 = vunpack.c.h.b16 %v266
    %v466 = vunpack.c.l.b16 %v267
    %v467 = vunpack.c.h.b16 %v267
    %v468 = vunpack.c.l.b16 %v268
    %v469 = vunpack.c.h.b16 %v268
    %v470 = vunpack.c.l.b16 %v269
    %v471 = vunpack.c.h.b16 %v269
    %v472 = vunpack.c.l.b16 %v270
    %v473 = vunpack.c.h.b16 %v270
    %v474 = vunpack.c.l.b16 %v271
    %v475 = vunpack.c.h.b16 %v271
    %v476 = vunpack.c.l.b16 %v272
    %v477 = vunpack.c.h.b16 %v272
    %v478 = vunpack.c.l.b16 %v273
    %v479 = vunpack.c.h.b16 %v273
    %v480 = vunpack.c.l.b16 %v274
    %v481 = vunpack.c.h.b16 %v274
    %v482 = vunpack.c.l.b16 %v275
    %v483 = vunpack.c.h.b16 %v275
    %v484 = vunpack.c.l.b16 %v276
    %v485 = vunpack.c.h.b16 %v276
    %v486 = vunpack.c.l.b16 %v277
    %v487 = vunpack.c.h.b16 %v277
    %v488 = vunpack.c.l.b16 %v278
    %v489 = vunpack.c.h.b16 %v278
    %v490 = vunpack.c.l.b16 %v279
    %v491 = vunpack.c.h.b16 %v279
    %v492 = vunpack.c.l.b16 %v280
    %v493 = vunpack.c.h.b16 %v280
    %v494 = vunpack.c.l.b16 %v281
    %v495 = vunpack.c.h.b16 %v281
    %v496 = vunpack.c.l.b16 %v282
    %v497 = vunpack.c.h.b16 %v282
    %v498 = vunpack.c.l.b16 %v283
    %v499 = vunpack.c.h.b16 %v283
    %v500 = vunpack.c.l.b16 %v284
    %v501 = vunpack.c.h.b16 %v284
    %v502 = vunpack.c.l.b16 %v285
    %v503 = vunpack.c.h.b16 %v285
    %v504 = vunpack.c.l.b16 %v286
    %v505 = vunpack.c.h.b16 %v286
    %v506 = vunpack.c.l.b16 %v287
    %v507 = vunpack.c.h.b16 %v287
    %v508 = vunpack.c.l.b16 %v288
    %v509 = vunpack.c.h.b16 %v288
    %v510 = vunpack.c.l.b16 %v289
    %v511 = vunpack.c.h.b16 %v289
    %v512 = vunpack.c.l.b16 %v290
    %v513 = vunpack.c.h.b16 %v290
    %v514 = vunpack.c.l.b16 %v291
    %v515 = vunpack.c.h.b16 %v291
    %v516 = vunpack.c.l.b16 %v292
    %v517 = vunpack.c.h.b16 %v292
    %v518 = vunpack.c.l.b16 %v293
    %v519 = vunpack.c.h.b16 %v293
    %v520 = vunpack.c.l.b16 %v294
    %v521 = vunpack.c.h.b16 %v294
    %v522 = vunpack.c.l.b16 %v295
    %v523 = vunpack.c.h.b16 %v295
    %v524 = vunpack.c.l.b16 %v296
    %v525 = vunpack.c.h.b16 %v296
    %v526 = vunpack.c.l.b16 %v297
    %v527 = vunpack.c.h.b16 %v297
    %v528 = vunpack.c.l.b16 %v298
    %v529 = vunpack.c.h.b16 %v298
    %v530 = vpack.c.b16 %v406, %v402
    %v531 = vpack.c.b16 %v407, %v403
    %v532 = vpack.c.b16 %v408, %v404
    %v533 = vpack.c.b16 %v409, %v405
    %v534 = vpack.c.b16 %v414, %v410
    %v535 = vpack.c.b16 %v415, %v411
    %v536 = vpack.c.b16 %v416, %v412
    %v537 = vpack.c.b16 %v417, %v413
    %v538 = vpack.c.b16 %v422, %v418
    %v539 = vpack.c.b16 %v423, %v419
    %v540 = vpack.c.b16 %v424, %v420
    %v541 = vpack.c.b16 %v425, %v421
    %v542 = vpack.c.b16 %v430, %v426
    %v543 = vpack.c.b16 %v431, %v427
    %v544 = vpack.c.b16 %v432, %v428
    %v545 = vpack.c.b16 %v433, %v429
    %v546 = vpack.c.b16 %v438, %v434
    %v547 = vpack.c.b16 %v439, %v435
    %v548 = vpack.c.b16 %v440, %v436
    %v549 = vpack.c.b16 %v441, %v437
    %v550 = vpack.c.b16 %v446, %v442
    %v551 = vpack.c.b16 %v447, %v443
    %v552 = vpack.c.b16 %v448, %v444
    %v553 = vpack.c.b16 %v449, %v445
    %v554 = vpack.c.b16 %v454, %v450
    %v555 = vpack.c.b16 %v455, %v451
    %v556 = vpack.c.b16 %v456, %v452
    %v557 = vpack.c.b16 %v457, %v453
    %v558 = vpack.c.b16 %v462, %v458
    %v559 = vpack.c.b16 %v463, %v459
    %v560 = vpack.c.b16 %v464, %v460
    %v561 = vpack.c.b16 %v465, %v461
    %v562 = vpack.c.b16 %v470, %v466
    %v563 = vpack.c.b16 %v471, %v467
    %v564 = vpack.c.b16 %v472, %v468
    %v565 = vpack.c.b16 %v473, %v469
    %v566 = vpack.c.b16 %v478, %v474
    %v567 = vpack.c.b16 %v479, %v475
    %v568 = vpack.c.b16 %v480, %v476
    %v569 = vpack.c.b16 %v481, %v477
    %v570 = vpack.c.b16 %v486, %v482
    %v571 = vpack.c.b16 %v487, %v483
    %v572 = vpack.c.b16 %v488, %v484
    %v573 = vpack.c.b16 %v489, %v485
    %v574 = vpack.c.b16 %v494, %v490
    %v575 = vpack.c.b16 %v495, %v491
    %v576 = vpack.c.b16 %v496, %v492
    %v577 = vpack.c.b16 %v497, %v493
    %v578 = vpack.c.b16 %v502, %v498
    %v579 = vpack.c.b16 %v503, %v499
    %v580 = vpack.c.b16 %v504, %v500
    %v581 = vpack.c.b16 %v505, %v501
    %v582 = vpack.c.b16 %v510, %v506
    %v583 = vpack.c.b16 %v511, %v507
    %v584 = vpack.c.b16 %v512, %v508
    %v585 = vpack.c.b16 %v513, %v509
    %v586 = vpack.c.b16 %v518, %v514
    %v587 = vpack.c.b16 %v519, %v515
    %v588 = vpack.c.b16 %v520, %v516
    %v589 = vpack.c.b16 %v521, %v517
    %v590 = vpack.c.b16 %v526, %v522
    %v591 = vpack.c.b16 %v527, %v523
    %v592 = vpack.c.b16 %v528, %v524
    %v593 = vpack.c.b16 %v529, %v525
    %658 = vmatprep.subr.bf16.mxu0 %v559
    %659 = vmatpush1.bf16.msra.mxu0 %v558
    %660 = vmatprep.subr.bf16.mxu0 %v555
    %661 = vmatpush1.bf16.msra.mxu0 %v554
    %662 = vmatprep.subr.bf16.mxu0 %v551
    %663 = vmatpush1.bf16.msra.mxu0 %v550
    %664 = vmatprep.subr.bf16.mxu0 %v547
    %665 = vmatpush1.bf16.msra.mxu0 %v546
    %666 = vmatprep.subr.bf16.mxu0 %v543
    %667 = vmatpush1.bf16.msra.mxu0 %v542
    %668 = vmatprep.subr.bf16.mxu0 %v539
    %669 = vmatpush1.bf16.msra.mxu0 %v538
    %670 = vmatprep.subr.bf16.mxu0 %v535
    %671 = vmatpush1.bf16.msra.mxu0 %v534
    %672 = vmatprep.subr.bf16.mxu0 %v531
    %673 = vmatpush1.bf16.msra.mxu0 %v530
    %674 = vmatprep.subr.bf16.mxu0 %v591
    %675 = vmatpush2.bf16.msra.mxu0 %v590
    %676 = vmatprep.subr.bf16.mxu0 %v587
    %677 = vmatpush2.bf16.msra.mxu0 %v586
    %678 = vmatprep.subr.bf16.mxu0 %v583
    %679 = vmatpush2.bf16.msra.mxu0 %v582
    %680 = vmatprep.subr.bf16.mxu0 %v579
    %681 = vmatpush2.bf16.msra.mxu0 %v578
    %682 = vmatprep.subr.bf16.mxu0 %v575
    %683 = vmatpush2.bf16.msra.mxu0 %v574
    %684 = vmatprep.subr.bf16.mxu0 %v571
    %685 = vmatpush2.bf16.msra.mxu0 %v570
    %686 = vmatprep.subr.bf16.mxu0 %v567
    %687 = vmatpush2.bf16.msra.mxu0 %v566
    %688 = vmatprep.subr.bf16.mxu0 %v563
    %689 = vmatpush2.bf16.msra.mxu0 %v562
    %690 = vmatprep.mubr.bf16.mxu0 %v335
    %691 = vmatmul.mubr.bf16.gmra.mxu0 %v334
    %v692 = vpop.f32.mrf.mxu0
    %v693 = vadd.f32 %v304, %v692
    %v694 = vpop.f32.mrf.mxu0
    %v695 = vadd.f32 %v308, %v694
    %v696 = vpop.f32.mrf.mxu0
    %v697 = vpop.f32.mrf.mxu0
    %698 = vdwg.mxu0
    %699 = vmatprep.subr.bf16.mxu0 %v561
    %700 = vmatpush1.bf16.msra.mxu0 %v560
    %701 = vmatprep.subr.bf16.mxu0 %v557
    %702 = vmatpush1.bf16.msra.mxu0 %v556
    %703 = vmatprep.subr.bf16.mxu0 %v553
    %704 = vmatpush1.bf16.msra.mxu0 %v552
    %705 = vmatprep.subr.bf16.mxu0 %v549
    %706 = vmatpush1.bf16.msra.mxu0 %v548
    %707 = vmatprep.subr.bf16.mxu0 %v545
    %708 = vmatpush1.bf16.msra.mxu0 %v544
    %709 = vmatprep.subr.bf16.mxu0 %v541
    %710 = vmatpush1.bf16.msra.mxu0 %v540
    %711 = vmatprep.subr.bf16.mxu0 %v537
    %712 = vmatpush1.bf16.msra.mxu0 %v536
    %713 = vmatprep.subr.bf16.mxu0 %v533
    %714 = vmatpush1.bf16.msra.mxu0 %v532
    %715 = vmatprep.subr.bf16.mxu0 %v593
    %716 = vmatpush2.bf16.msra.mxu0 %v592
    %717 = vmatprep.subr.bf16.mxu0 %v589
    %718 = vmatpush2.bf16.msra.mxu0 %v588
    %719 = vmatprep.subr.bf16.mxu0 %v585
    %720 = vmatpush2.bf16.msra.mxu0 %v584
    %721 = vmatprep.subr.bf16.mxu0 %v581
    %722 = vmatpush2.bf16.msra.mxu0 %v580
    %723 = vmatprep.subr.bf16.mxu0 %v577
    %724 = vmatpush2.bf16.msra.mxu0 %v576
    %725 = vmatprep.subr.bf16.mxu0 %v573
    %726 = vmatpush2.bf16.msra.mxu0 %v572
    %727 = vmatprep.subr.bf16.mxu0 %v569
    %728 = vmatpush2.bf16.msra.mxu0 %v568
    %729 = vmatprep.subr.bf16.mxu0 %v565
    %730 = vmatpush2.bf16.msra.mxu0 %v564
    %731 = vmatprep.mubr.bf16.mxu0 %v335
    %732 = vmatmul.mubr.bf16.gmra.mxu0 %v334
    %v733 = vpop.f32.mrf.mxu0
    %v734 = vadd.f32 %v312, %v733
    %v735 = vpop.f32.mrf.mxu0
    %v736 = vadd.f32 %v316, %v735
    %v737 = vpop.f32.mrf.mxu0
    %v738 = vpop.f32.mrf.mxu0
    %739 = vdwg.mxu0
    %v744 = vcombine.low %v693, %v695
    %v745 = vcombine.low %v734, %v736
    %v747 = vunpack.c.l.s4 1983009808
    %v748 = vunpack.c.0.s8 %v747
    %v749 = vlaneseq
    %v750 = vshrl.u32 %v749, 7
    %v751 = vsub.s32 %v748, %v750
    %v752 = vrot.slane %v744, %v751
    %v754 = vunpack.c.l.s4 1983009808
    %v755 = vunpack.c.0.s8 %v754
    %v756 = vlaneseq
    %v757 = vshrl.u32 %v756, 7
    %v758 = vsub.s32 %v755, %v757
    %v759 = vrot.slane %v745, %v758
    %v760 = vcombine.low %v752, %v759
    %762 = vst [vmem:[#allocation11] sm:$0xff] %v760
    // Predicated region
    $region50: #{tpu_custom_call.1} parent=1 // pred_check
      _
    $region51: #{tpu_custom_call.1} parent=1 // pred_check_branch
      %764 = sbr.rel (0) target = $region53
    $region52: #{tpu_custom_call.1} parent=1 // pred_region
      %s766 = ssub.s32 128, 128
      %767 = vsyncadd [#allocation4], %s766
      %s769 = sshll.u32 [#allocation11], 4
      %s770 = int_to_ptr.vmem [resolvable:$true] %s769
      %772 = dma.vmem_to_hbm [thread:$0]  %s770, 128, %s7, [#allocation4]
    $region53: #{tpu_custom_call.1} parent=1 // pred_fallthru
      _
    // Predicated region
    $region54: #{tpu_custom_call.1} parent=1 // pred_check
      _
    $region55: #{tpu_custom_call.1} parent=1 // pred_check_branch
      %774 = sbr.rel (0) target = $region57
    $region56: #{tpu_custom_call.1} parent=1 // pred_region
      %775 = dma.done [#allocation4], 128
    $region57: #{tpu_custom_call.1} parent=1 // pred_fallthru
      _
    %776 = vsyncpa [#allocation3], 1
    %777 = vsyncpa [#allocation6], 1
    %778 = vsyncpa [#allocation9], 1
    %779 = vsyncpa [#allocation4], 1

</llo_original>
